<compile_context>
chip_gen: v7x
topology: tpu7x:2x2x1
jax: 0.10.0
libtpu: 0.0.40
codegen_flags: <defaults>
</compile_context>

<pallas_src>
import functools

import jax
import jax.numpy as jnp
from jax.experimental import pallas as pl
from jax.experimental.pallas import tpu as pltpu


def _dyn_avg_pool_kernel(lengths_ref, inv_ref, x_ref, o_ref, acc_ref, *, need_mask):
    # lengths_ref: VMEM (TB, 1) int32   (clamped to L)
    # inv_ref:     VMEM (TB, 1) float32 (1 / length)
    # x_ref:       VMEM (TB, C, TL)
    # o_ref:       VMEM (TB, C)
    # acc_ref:     VMEM (TB, C) float32 scratch accumulator
    k = pl.program_id(1)

    @pl.when(k == 0)
    def _():
        acc_ref[...] = jnp.zeros_like(acc_ref)

    tb, c, tl = x_ref.shape
    x = x_ref[...].astype(jnp.float32)

    if need_mask:
        # Global position along L for this tile; positions >= length (which is
        # clamped to <= L) are zeroed, which also neutralizes any padded tail
        # of a partial last L block.
        pos = jax.lax.broadcasted_iota(jnp.int32, (tb, c, tl), dimension=2) + k * tl
        mask = pos < lengths_ref[...][:, :, None]           # (TB, C, TL)
        x = jnp.where(mask, x, jnp.float32(0.0))

    acc_ref[...] += jnp.sum(x, axis=2)                       # f32 accumulation

    @pl.when(k == pl.num_programs(1) - 1)
    def _():
        # Multiply by the precomputed reciprocal (no vdiv on the epilogue path).
        o_ref[...] = (acc_ref[...] * inv_ref[...]).astype(o_ref.dtype)


def dynamic_avg_pool1d(x, lengths=None):
    """x: (N, C, L); lengths: (N,) int or None. Returns (N, C)."""
    N, C, L = x.shape
    out_dtype = x.dtype

    if lengths is None:
        lengths_i32 = jnp.full((N,), L, dtype=jnp.int32)
    else:
        # torch.clamp(lengths, max=max_length). No min-clamp: length == 0 gives
        # inf/nan exactly like the PyTorch reference.
        lengths_i32 = jnp.minimum(lengths.astype(jnp.int32), jnp.int32(L))

    inv_len = 1.0 / lengths_i32.astype(jnp.float32)          # sums / lengths.float()
    lengths_2d = lengths_i32.reshape(N, 1)
    inv_2d = inv_len.reshape(N, 1)

    # ---- tile selection -------------------------------------------------
    itemsize = jnp.dtype(x.dtype).itemsize

    # Batch tile: full N if small, otherwise a multiple of 8 (sublane-dense
    # output tile) capped so blocks stay modest.
    if N <= 8:
        TB = N
    else:
        TB = max(8, min((N // 8) * 8, 64))

    # L tile: keep the whole L in one block when it fits a conservative VMEM
    # budget (double-buffered it stays well under even v7x's scoped limit);
    # otherwise tile L in multiples of 128 lanes.
    X_BLOCK_BUDGET = 8 * 1024 * 1024          # bytes per x block
    if TB * C * L * itemsize <= X_BLOCK_BUDGET:
        TL = L
    else:
        TL = (X_BLOCK_BUDGET // (TB * C * itemsize)) // 128 * 128
        TL = max(TL, 128)
        if TL >= L:
            TL = L

    nb = pl.cdiv(N, TB)
    nk = pl.cdiv(L, TL)

    # When there are no per-row lengths and L divides evenly into tiles, skip
    # the mask entirely (plain mean); otherwise mask (also guards padded tails).
    need_mask = (lengths is not None) or (L % TL != 0)

    kernel = functools.partial(_dyn_avg_pool_kernel, need_mask=need_mask)

    out = pl.pallas_call(
        kernel,
        out_shape=jax.ShapeDtypeStruct((N, C), out_dtype),
        grid=(nb, nk),
        in_specs=[
            pl.BlockSpec((TB, 1), lambda b, k: (b, 0)),        # lengths
            pl.BlockSpec((TB, 1), lambda b, k: (b, 0)),        # 1 / lengths
            pl.BlockSpec((TB, C, TL), lambda b, k: (b, 0, k)), # x
        ],
        out_specs=pl.BlockSpec((TB, C), lambda b, k: (b, 0)),
        scratch_shapes=[pltpu.VMEM((TB, C), jnp.float32)],
        compiler_params=pltpu.CompilerParams(
            dimension_semantics=("parallel", "arbitrary"),
            vmem_limit_bytes=64 * 1024 * 1024,
        ),
    )(lengths_2d, inv_2d, x)
    return out


def _reference(x, lengths=None):
    N, C, L = x.shape
    if lengths is None:
        return jnp.mean(x, axis=2)
    lengths = jnp.minimum(lengths, L)
    rng = jnp.arange(L)[None, :]                       # (1, L)
    mask = (rng < lengths[:, None]).astype(jnp.float32)
    sums = jnp.sum(x.astype(jnp.float32) * mask[:, None, :], axis=2)
    return (sums / lengths.astype(jnp.float32)[:, None]).astype(x.dtype)


if __name__ == "__main__":
    key = jax.random.PRNGKey(0)
    kx, kl, kx2, kl2 = jax.random.split(key, 4)

    # Small shapes consistent with the module's forward: (N, C, L)
    N, C, L = 2, 4, 16
    x = jax.random.normal(kx, (N, C, L), dtype=jnp.float32)
    lengths = jax.random.randint(kl, (N,), minval=1, maxval=L + 5)  # tests clamping

    out = dynamic_avg_pool1d(x, lengths)
    jax.block_until_ready(out)
    ref = _reference(x, lengths)
    assert out.shape == (N, C)
    assert jnp.allclose(out, ref, atol=1e-5, rtol=1e-5), (out, ref)

    # No-lengths path (plain mean over L)
    out2 = dynamic_avg_pool1d(x, None)
    jax.block_until_ready(out2)
    ref2 = _reference(x, None)
    assert jnp.allclose(out2, ref2, atol=1e-5, rtol=1e-5), (out2, ref2)

    # Slightly larger case to exercise the batched (TB >= 8) / lane-dense path.
    N2, C2, L2 = 16, 128, 256
    x2 = jax.random.normal(kx2, (N2, C2, L2), dtype=jnp.float32)
    lengths2 = jax.random.randint(kl2, (N2,), minval=1, maxval=L2 + 3)
    out3 = dynamic_avg_pool1d(x2, lengths2)
    jax.block_until_ready(out3)
    ref3 = _reference(x2, lengths2)
    assert jnp.allclose(out3, ref3, atol=1e-5, rtol=1e-5)

    print("KERNEL_OK")
</pallas_src>

<mosaic_0001>
module attributes {stable_mosaic.version = 11 : i64} {
  func.func @_dyn_avg_pool_kernel(%arg0: i32, %arg1: i32, %arg2: memref<2x1xi32, #tpu.memory_space<vmem>>, %arg3: memref<2x1xf32, #tpu.memory_space<vmem>>, %arg4: memref<2x4x16xf32, #tpu.memory_space<vmem>>, %arg5: memref<2x4xf32, #tpu.memory_space<vmem>>, %arg6: memref<2x4xf32, #tpu.memory_space<vmem>>) attributes {dimension_semantics = [#tpu.dimension_semantics<parallel>, #tpu.dimension_semantics<arbitrary>], iteration_bounds = array<i64: 1, 1>, scalar_prefetch = 0 : i64, scratch_operands = 1 : i64, tpu.core_type = #tpu.core_type<tc>, window_params = [{transform_indices = @transform_0, window_bounds = array<i64: 2, 1>}, {transform_indices = @transform_1, window_bounds = array<i64: 2, 1>}, {transform_indices = @transform_2, window_bounds = array<i64: 2, 4, 16>}, {transform_indices = @transform_3, window_bounds = array<i64: 2, 4>}]} {
    %c0_i32 = arith.constant 0 : i32
    %0 = arith.cmpi eq, %arg1, %c0_i32 : i32
    %1 = arith.extui %0 : i1 to i32
    %c0_i32_0 = arith.constant 0 : i32
    %2 = arith.cmpi ne, %1, %c0_i32_0 : i32
    scf.if %2 {
      %cst_12 = arith.constant 0.000000e+00 : f32
      %21 = vector.broadcast %cst_12 : f32 to vector<2x4xf32>
      %c0_13 = arith.constant 0 : index
      %c0_14 = arith.constant 0 : index
      %22 = vector.load %arg6[%c0_13, %c0_14] : memref<2x4xf32, #tpu.memory_space<vmem>>, vector<2x4xf32>
      tpu.vector_store %arg6[%c0_13, %c0_14], %21 {strides = array<i32>} : memref<2x4xf32, #tpu.memory_space<vmem>>, vector<2x4xf32>,
    } else {
    }
    %c0 = arith.constant 0 : index
    %c0_1 = arith.constant 0 : index
    %c0_2 = arith.constant 0 : index
    %3 = vector.load %arg4[%c0, %c0_1, %c0_2] : memref<2x4x16xf32, #tpu.memory_space<vmem>>, vector<2x4x16xf32>
    %4 = tpu.iota {dimensions = array<i32: 2>} : vector<2x4x16xi32>
    %c16_i32 = arith.constant 16 : i32
    %5 = arith.muli %arg1, %c16_i32 : i32
    %6 = vector.broadcast %5 : i32 to vector<2x4x16xi32>
    %7 = arith.addi %4, %6 : vector<2x4x16xi32>
    %c0_3 = arith.constant 0 : index
    %c0_4 = arith.constant 0 : index
    %8 = vector.load %arg2[%c0_3, %c0_4] : memref<2x1xi32, #tpu.memory_space<vmem>>, vector<2x1xi32>
    %9 = vector.shape_cast %8 : vector<2x1xi32> to vector<2x1x1xi32>
    %10 = vector.broadcast %9 : vector<2x1x1xi32> to vector<2x4x16xi32>
    %11 = arith.cmpi slt, %7, %10 : vector<2x4x16xi32>
    %cst = arith.constant 0.000000e+00 : f32
    %12 = vector.broadcast %cst : f32 to vector<2x4x16xf32>
    %13 = arith.select %11, %3, %12 : vector<2x4x16xi1>, vector<2x4x16xf32>
    %c0_5 = arith.constant 0 : index
    %c0_6 = arith.constant 0 : index
    %14 = vector.load %arg6[%c0_5, %c0_6] : memref<2x4xf32, #tpu.memory_space<vmem>>, vector<2x4xf32>
    %cst_7 = arith.constant dense<0.000000e+00> : vector<2x4xf32>
    %15 = vector.multi_reduction <add>, %13, %cst_7 [2] : vector<2x4x16xf32> to vector<2x4xf32>
    %16 = arith.addf %14, %15 : vector<2x4xf32>
    %c0_8 = arith.constant 0 : index
    %c0_9 = arith.constant 0 : index
    %17 = vector.load %arg6[%c0_8, %c0_9] : memref<2x4xf32, #tpu.memory_space<vmem>>, vector<2x4xf32>
    tpu.vector_store %arg6[%c0_8, %c0_9], %16 {strides = array<i32>} : memref<2x4xf32, #tpu.memory_space<vmem>>, vector<2x4xf32>,
    %c0_i32_10 = arith.constant 0 : i32
    %18 = arith.cmpi eq, %arg1, %c0_i32_10 : i32
    %19 = arith.extui %18 : i1 to i32
    %c0_i32_11 = arith.constant 0 : i32
    %20 = arith.cmpi ne, %19, %c0_i32_11 : i32
    scf.if %20 {
      %c0_12 = arith.constant 0 : index
      %c0_13 = arith.constant 0 : index
      %21 = vector.load %arg6[%c0_12, %c0_13] : memref<2x4xf32, #tpu.memory_space<vmem>>, vector<2x4xf32>
      %c0_14 = arith.constant 0 : index
      %c0_15 = arith.constant 0 : index
      %22 = vector.load %arg3[%c0_14, %c0_15] : memref<2x1xf32, #tpu.memory_space<vmem>>, vector<2x1xf32>
      %23 = vector.broadcast %22 : vector<2x1xf32> to vector<2x4xf32>
      %24 = arith.mulf %21, %23 : vector<2x4xf32>
      %c0_16 = arith.constant 0 : index
      %c0_17 = arith.constant 0 : index
      %25 = vector.load %arg5[%c0_16, %c0_17] : memref<2x4xf32, #tpu.memory_space<vmem>>, vector<2x4xf32>
      tpu.vector_store %arg5[%c0_16, %c0_17], %24 {strides = array<i32>} : memref<2x4xf32, #tpu.memory_space<vmem>>, vector<2x4xf32>,
    } else {
    }
    return
  }
  func.func @transform_0(%arg0: i32, %arg1: i32) -> (i32, i32) {
    %c0_i32 = arith.constant 0 : i32
    %c0_i32_0 = arith.constant 0 : i32
    return %arg0, %c0_i32 : i32, i32
  }
  func.func @transform_1(%arg0: i32, %arg1: i32) -> (i32, i32) {
    %c0_i32 = arith.constant 0 : i32
    %c0_i32_0 = arith.constant 0 : i32
    return %arg0, %c0_i32 : i32, i32
  }
  func.func @transform_2(%arg0: i32, %arg1: i32) -> (i32, i32, i32) {
    %c0_i32 = arith.constant 0 : i32
    %c0_i32_0 = arith.constant 0 : i32
    return %arg0, %c0_i32, %arg1 : i32, i32, i32
  }
  func.func @transform_3(%arg0: i32, %arg1: i32) -> (i32, i32) {
    %c0_i32 = arith.constant 0 : i32
    %c0_i32_0 = arith.constant 0 : i32
    return %arg0, %c0_i32 : i32, i32
  }
}

</mosaic_0001>

<llo_original>
// kernel: tpu_custom_call.1
$region0: #{tpu_custom_call.1}
  #allocation0 [shape = 'u32[]', space=smem, size = 0x4, offset = 0x4, fixed_abs, tag = 'smem constant byte address 0x4 - core index']
  #allocation1 [shape = 'u32[144,128]{1,0:T(1,128)}', space=vmem, size = 0x12000, scoped, tag = 'internal scratch']
  #allocation2 [shape = 'f32[2,4]{1,0:T(2,128)}', space=vmem, size = 0x400, scoped, tag = 'scratch operand']
  %s0 = inlined_call_operand.hbm [shape: s32[2,1], index: 0, kind: input, shape index: {}]
  %s1 = inlined_call_operand.hbm [shape: f32[2,1], index: 1, kind: input, shape index: {}]
  %s2 = inlined_call_operand.hbm [shape: f32[2,4,16], index: 2, kind: input, shape index: {}]
  %s3 = inlined_call_operand.hbm [shape: f32[2,4], index: 3, kind: output, shape index: {}]
  %s4 = sld [smem:[#allocation0]]
  $region42: #{tpu_custom_call.1} parent=0
    _
  %s6 = ssub.s32 1, %s4
  %s7 = scalar_select 0, %s6, %s4
  $region1: #{tpu_custom_call.1} parent=0
    #allocation3 [shape = 'u8[1024]{0}', space=vmem, size = 0x400, scoped, tag = 'input window, operand 0, single buffered']
    #allocation4 [shape = 's32[1]{0}', space=sflag, size = 0x4, scoped, tag = 'scoped memory for tpu_custom_call.1']
    #allocation5 [shape = 's32[1]{0}', space=sflag, size = 0x4, scoped, tag = 'scoped memory for tpu_custom_call.1']
    #allocation6 [shape = 'u8[1024]{0}', space=vmem, size = 0x400, scoped, tag = 'input window, operand 1, single buffered']
    #allocation7 [shape = 's32[1]{0}', space=sflag, size = 0x4, scoped, tag = 'scoped memory for tpu_custom_call.1']
    #allocation8 [shape = 'u8[4096]{0}', space=vmem, size = 0x1000, scoped, tag = 'input window, operand 2, single buffered']
    #allocation9 [shape = 'u8[1024]{0}', space=vmem, size = 0x400, scoped, tag = 'output window, operand 0, single buffered']
    %8 = vsyncpa [#allocation4], 0
    %9 = vsyncpa [#allocation7], 0
    %10 = vsyncpa [#allocation5], 0
    // Predicated region
    $region2: #{tpu_custom_call.1} parent=1 // pred_check
      _
    $region3: #{tpu_custom_call.1} parent=1 // pred_check_branch
      %12 = sbr.rel (0) target = $region5
    $region4: #{tpu_custom_call.1} parent=1 // pred_region
      %s14 = ssub.s32 32, 32
      %15 = vsyncadd [#allocation4], %s14
      %s17 = sshll.u32 [#allocation3], 4
      %s18 = int_to_ptr.vmem [resolvable:$true] %s17
      %20 = dma.hbm_to_vmem [thread:$0]  %s0, 32, %s18, [#allocation4]
    $region5: #{tpu_custom_call.1} parent=1 // pred_fallthru
      _
    // Predicated region
    $region6: #{tpu_custom_call.1} parent=1 // pred_check
      _
    $region7: #{tpu_custom_call.1} parent=1 // pred_check_branch
      %22 = sbr.rel (0) target = $region9
    $region8: #{tpu_custom_call.1} parent=1 // pred_region
      %s24 = ssub.s32 32, 32
      %25 = vsyncadd [#allocation7], %s24
      %s27 = sshll.u32 [#allocation6], 4
      %s28 = int_to_ptr.vmem [resolvable:$true] %s27
      %30 = dma.hbm_to_vmem [thread:$0]  %s1, 32, %s28, [#allocation7]
    $region9: #{tpu_custom_call.1} parent=1 // pred_fallthru
      _
    // Predicated region
    $region10: #{tpu_custom_call.1} parent=1 // pred_check
      _
    $region11: #{tpu_custom_call.1} parent=1 // pred_check_branch
      %32 = sbr.rel (0) target = $region13
    $region12: #{tpu_custom_call.1} parent=1 // pred_region
      %s34 = ssub.s32 128, 128
      %35 = vsyncadd [#allocation7], %s34
      %s36 = sshll.u32 [#allocation8], 4
      %s37 = int_to_ptr.vmem [resolvable:$true] %s36
      %42 = dma.hbm_to_vmem [thread:$0]  %s2, 128, %s37, [#allocation7], 64, 64, 4
    $region13: #{tpu_custom_call.1} parent=1 // pred_fallthru
      _
    // Predicated region
    $region14: #{tpu_custom_call.1} parent=1 // pred_check
      _
    $region15: #{tpu_custom_call.1} parent=1 // pred_check_branch
      %44 = sbr.rel (0) target = $region17
    $region16: #{tpu_custom_call.1} parent=1 // pred_region
      %45 = dma.done [#allocation4], 32
    $region17: #{tpu_custom_call.1} parent=1 // pred_fallthru
      _
    // Predicated region
    $region18: #{tpu_custom_call.1} parent=1 // pred_check
      _
    $region19: #{tpu_custom_call.1} parent=1 // pred_check_branch
      %47 = sbr.rel (0) target = $region21
    $region20: #{tpu_custom_call.1} parent=1 // pred_region
      %48 = dma.done [#allocation7], 32
    $region21: #{tpu_custom_call.1} parent=1 // pred_fallthru
      _
    // Predicated region
    $region22: #{tpu_custom_call.1} parent=1 // pred_check
      _
    $region23: #{tpu_custom_call.1} parent=1 // pred_check_branch
      %50 = sbr.rel (0) target = $region25
    $region24: #{tpu_custom_call.1} parent=1 // pred_region
      %51 = dma.done [#allocation7], 128
    $region25: #{tpu_custom_call.1} parent=1 // pred_fallthru
      _
    %p52 = scmp.eq.s32.totalorder 0, 0
    // Predicated region
    $region26: #{tpu_custom_call.1} parent=1 // pred_check
      %p53 = pneg %p52
    $region27: #{tpu_custom_call.1} parent=1 // pred_check_branch
      %55 = sbr.rel (%p53) target = $region29
    $region28: #{tpu_custom_call.1} parent=1 // pred_region
      %vm56 = vcmask 25600
      %57 = vst.msk [vmem:[#allocation2] sm:$0x3] %vm56, 0.0
    $region29: #{tpu_custom_call.1} parent=1 // pred_fallthru
      _
    %v58 = vld [vmem:[#allocation8] sm:$0xf]
    %v59 = vld [vmem:[#allocation8 + $0x4] sm:$0xf]
    %v60 = vlaneseq
    %v61 = vand.u32 %v60, 127
    %s62 = smul.u32 0, 16
    %v63 = vstv %s62
    %v64 = vadd.s32 %v61, %v63
    %v65 = vld [vmem:[#allocation3] sm:$0x3]
    %v67 = vunpack.c.l.s4 1966171168
    %v68 = vunpack.c.0.s8 %v67
    %v69 = vlaneseq
    %v70 = vshrl.u32 %v69, 7
    %v71 = vsub.s32 %v68, %v70
    %v72 = vrot.slane %v65, %v71
    %v73 = vcombine.high %v72, %v72
    %v75 = vunpack.c.l.s4 1966171168
    %v76 = vunpack.c.0.s8 %v75
    %v77 = vlaneseq
    %v78 = vshrl.u32 %v77, 7
    %v79 = vsub.s32 %v76, %v78
    %v80 = vrot.slane %v72, %v79
    %v82 = vunpack.c.l.s4 1966171168
    %v83 = vunpack.c.0.s8 %v82
    %v84 = vlaneseq
    %v85 = vshrl.u32 %v84, 7
    %v86 = vsub.s32 %v83, %v85
    %v87 = vrot.slane %v73, %v86
    %v88 = vlaneseq
    %v89 = vshrl.u32 %v88, 7
    %v90 = vsub.s32 0, %v89
    %v91 = vrot.slane %v80, %v90
    %v92 = vlaneseq
    %v93 = vshrl.u32 %v92, 7
    %v94 = vsub.s32 0, %v93
    %v95 = vrot.slane %v87, %v94
    %96 = vset.pattern.permute.xlu0 0
    %97 = vperm.xlu0 %96, %v91
    %v98 = vpop.permute.xlu0 %97
    %99 = vset.pattern.permute.xlu0 0
    %100 = vperm.xlu0 %99, %v95
    %v101 = vpop.permute.xlu0 %100
    %vm102 = vcmp.lt.s32.totalorder %v64, %v98
    %vm103 = vcmp.lt.s32.totalorder %v64, %v101
    %v104 = vsel %vm102, %v58, 0.0
    %v105 = vsel %vm103, %v59, 0.0
    %v106 = vld [vmem:[#allocation2] sm:$0x3]
    %vm107 = vcmask 125952
    %v108 = vsel %vm107, %v104, 0.0
    %109 = vadd.xlane.f32.xlu0 %v108
    %v110 = vpop.xlane.xlu0 %109
    %v111 = vsel %vm107, %v105, 0.0
    %112 = vadd.xlane.f32.xlu0 %v111
    %v113 = vpop.xlane.xlu0 %112
    %v116 = vlaneseq
    %v117 = vshrl.u32 %v116, 7
    %v118 = vsub.s32 %v61, %v117
    %v119 = vrot.slane %v110, %v118
    %v120 = vlaneseq
    %v121 = vshrl.u32 %v120, 7
    %v122 = vsub.s32 %v61, %v121
    %v123 = vrot.slane %v113, %v122
    %vm124 = vcmask 1041409
    %v125 = vsel %vm124, %v123, %v119
    %v127 = vadd.f32 %v106, %v125
    %vm128 = vcmask 25600
    %129 = vst.msk [vmem:[#allocation2] sm:$0x3] %vm128, %v127
    // Predicated region
    $region30: #{tpu_custom_call.1} parent=1 // pred_check
      %p130 = pneg %p52
    $region31: #{tpu_custom_call.1} parent=1 // pred_check_branch
      %132 = sbr.rel (%p130) target = $region33
    $region32: #{tpu_custom_call.1} parent=1 // pred_region
      %v133 = vld [vmem:[#allocation2] sm:$0x3]
      %v134 = vld [vmem:[#allocation6] sm:$0x3]
      %136 = vset.pattern.permute.xlu0 0
      %137 = vperm.xlu0 %136, %v134
      %v138 = vpop.permute.xlu0 %137
      %v140 = vmul.f32 %v133, %v138
      %141 = vst.msk [vmem:[#allocation9] sm:$0x3] %vm128, %v140
    $region33: #{tpu_custom_call.1} parent=1 // pred_fallthru
      _
    // Predicated region
    $region34: #{tpu_custom_call.1} parent=1 // pred_check
      _
    $region35: #{tpu_custom_call.1} parent=1 // pred_check_branch
      %143 = sbr.rel (0) target = $region37
    $region36: #{tpu_custom_call.1} parent=1 // pred_region
      %s145 = ssub.s32 32, 32
      %146 = vsyncadd [#allocation5], %s145
      %s148 = sshll.u32 [#allocation9], 4
      %s149 = int_to_ptr.vmem [resolvable:$true] %s148
      %151 = dma.vmem_to_hbm [thread:$0]  %s149, 32, %s3, [#allocation5]
    $region37: #{tpu_custom_call.1} parent=1 // pred_fallthru
      _
    // Predicated region
    $region38: #{tpu_custom_call.1} parent=1 // pred_check
      _
    $region39: #{tpu_custom_call.1} parent=1 // pred_check_branch
      %153 = sbr.rel (0) target = $region41
    $region40: #{tpu_custom_call.1} parent=1 // pred_region
      %154 = dma.done [#allocation5], 32
    $region41: #{tpu_custom_call.1} parent=1 // pred_fallthru
      _
    %155 = vsyncpa [#allocation4], 1
    %156 = vsyncpa [#allocation7], 1
    %157 = vsyncpa [#allocation5], 1

</llo_original>
